<compile_context>
chip_gen: v7x
topology: tpu7x:2x2x1
jax: 0.10.0
libtpu: 0.0.40
codegen_flags: <defaults>
</compile_context>

<pallas_src>
from functools import partial

import numpy as np
import jax
import jax.numpy as jnp
from jax import lax
from jax.experimental import pallas as pl
from jax.experimental.pallas import tpu as pltpu

_VMEM = pl.BlockSpec(memory_space=pltpu.MemorySpace.VMEM)


# ----------------------------------------------------------------------------
# The single fused kernel.
#   inputs : x_aug   (Cin+1, N*HW)   image batch, flat lane-dense, bias row of ones
#            pack_s  (Cs+1, Cin+1+K) [conv_w | conv_b | head_w ; 0 | head_b]
#            pack_t  (Ct+1, Cin+1+K) same layout for the (frozen) teacher
#   outputs: logits_s (N, K), loss_inter (1,1), loss_logit (1,1)
# ----------------------------------------------------------------------------
def _distill_fused_kernel(x_ref, ps_ref, pt_ref,
                          logits_ref, li_ref, ll_ref, *,
                          n, temperature, logit_standard,
                          enable_inter, compute_logit):
    ca = x_ref.shape[0]            # Cin + 1 (augmented contraction dim)
    nhw = x_ref.shape[1]           # N * H * W  (lane axis, multiple of 128)
    hw = nhw // n
    k = ps_ref.shape[1] - ca       # num classes
    inv_hw = 1.0 / hw
    inv_t = 1.0 / temperature

    x = x_ref[...]                                               # (Cin+1, N*HW)

    # Block-diagonal GAP matrix, built once from iotas (no integer division).
    # pool[i, p] = 1/HW  if  i*HW <= p < (i+1)*HW  else 0
    img = lax.broadcasted_iota(jnp.int32, (n, nhw), 0)
    pos = lax.broadcasted_iota(jnp.int32, (n, nhw), 1)
    lo = img * hw
    pool = jnp.where((pos >= lo) & (pos < lo + hw),
                     jnp.float32(inv_hw), jnp.float32(0.0))      # (N, N*HW)

    def backbone(p_ref):
        """1x1 conv + ReLU features, GAP + linear head.  Everything stays in VMEM."""
        c = p_ref.shape[0] - 1
        p = p_ref[...]
        w_aug = p[0:c, 0:ca]                                     # (C, Cin+1) = [conv_w | conv_b]
        wh = p[0:c, ca:ca + k]                                   # (C, K)
        bh = p[c:c + 1, ca:ca + k]                               # (1, K)
        feat = jnp.maximum(
            jnp.dot(w_aug, x, preferred_element_type=jnp.float32), 0.0)   # (C, N*HW)
        # GAP folded into the head: pooled(N,C) = pool(N,NHW) . feat(C,NHW)^T  (one MXU dot)
        pooled = lax.dot_general(pool, feat, (((1,), (1,)), ((), ())),
                                 preferred_element_type=jnp.float32)      # (N, C)
        logits = jnp.dot(pooled, wh, preferred_element_type=jnp.float32) + bh  # (N, K)
        return feat, logits

    feat_s, logits_s = backbone(ps_ref)
    feat_t, logits_t = backbone(pt_ref)          # teacher feats/logits never leave VMEM
    logits_ref[...] = logits_s                   # single lane-dense store of the student logits

    # ---- inter-feature ("attention" transform) distillation loss ----
    if enable_inter:
        cs = ps_ref.shape[0] - 1
        ct = pt_ref.shape[0] - 1
        a_s = jnp.sum(feat_s * feat_s, axis=0, keepdims=True) * (1.0 / cs)   # (1, N*HW)
        a_t = jnp.sum(feat_t * feat_t, axis=0, keepdims=True) * (1.0 / ct)
        acc = jnp.zeros((1, 1), jnp.float32)
        for i in range(n):                        # N is tiny & static; grid axis at real N
            sl = slice(i * hw, (i + 1) * hw)      # static, 128-aligned lane slice
            rs = a_s[:, sl]
            rt = a_t[:, sl]
            # F.normalize: x / max(||x||, 1e-12) == x * rsqrt(max(||x||^2, 1e-24))  (EUP rsqrt)
            rs = rs * lax.rsqrt(jnp.maximum(jnp.sum(rs * rs, axis=-1, keepdims=True), 1e-24))
            rt = rt * lax.rsqrt(jnp.maximum(jnp.sum(rt * rt, axis=-1, keepdims=True), 1e-24))
            d = rt - rs
            acc = acc + jnp.sum(d * d, axis=-1, keepdims=True)
        li_ref[...] = acc * (1.0 / (n * hw))
    else:
        li_ref[...] = jnp.zeros((1, 1), jnp.float32)

    # ---- standardized-logit KL distillation loss (batched over rows) ----
    if compute_logit:
        def standardize(z):                       # torch.std is unbiased -> divide by K-1
            m = jnp.mean(z, axis=-1, keepdims=True)
            var = jnp.sum((z - m) * (z - m), axis=-1, keepdims=True) * (1.0 / (k - 1))
            return (z - m) / (1e-7 + jnp.sqrt(var))      # exact divide (feeds a loss)

        def log_softmax(z):
            zm = z - jnp.max(z, axis=-1, keepdims=True)
            return zm - jnp.log(jnp.sum(jnp.exp(zm), axis=-1, keepdims=True))

        zs = (standardize(logits_s) if logit_standard else logits_s) * inv_t
        zt = (standardize(logits_t) if logit_standard else logits_t) * inv_t
        log_ps = log_softmax(zs)
        log_pt = log_softmax(zt)
        pt_prob = jnp.exp(log_pt)                 # exact probabilities (no approx reciprocal)
        kl_rows = jnp.sum(pt_prob * (log_pt - log_ps), axis=-1, keepdims=True)   # (N, 1)
        ll_ref[...] = (jnp.sum(kl_rows, axis=0, keepdims=True)
                       * (temperature * temperature / n))
    else:
        ll_ref[...] = jnp.zeros((1, 1), jnp.float32)


# ----------------------------------------------------------------------------
# Host-side wrapper: layout prep + the single pallas_call.
# ----------------------------------------------------------------------------
def _distill_step(x_nchw, pack_s, pack_t, *, temperature, logit_standard,
                  enable_inter, compute_logit):
    n, cin, h, w = x_nchw.shape
    nhw = n * h * w
    # (N, Cin, H, W) -> (Cin, N*HW): lane axis = N*HW (lane-dense, multiple of 128),
    # contraction axis = Cin; append a row of ones so the conv bias fuses into the matmul.
    x3 = x_nchw.reshape(n, cin, h * w).transpose(1, 0, 2).reshape(cin, nhw)
    x_aug = jnp.concatenate([x3, jnp.ones((1, nhw), x3.dtype)], axis=0)

    k = pack_s.shape[1] - (cin + 1)
    kern = partial(_distill_fused_kernel, n=n,
                   temperature=float(temperature),
                   logit_standard=bool(logit_standard),
                   enable_inter=bool(enable_inter),
                   compute_logit=bool(compute_logit))
    logits, li, ll = pl.pallas_call(
        kern,
        out_shape=(jax.ShapeDtypeStruct((n, k), jnp.float32),
                   jax.ShapeDtypeStruct((1, 1), jnp.float32),
                   jax.ShapeDtypeStruct((1, 1), jnp.float32)),
        in_specs=[_VMEM, _VMEM, _VMEM],
        out_specs=(_VMEM, _VMEM, _VMEM),
        compiler_params=pltpu.CompilerParams(vmem_limit_bytes=32 * 1024 * 1024),
    )(x_aug, pack_s, pack_t)
    return logits, li[0, 0], ll[0, 0]


def _pack_params(conv_w, conv_b, head_w, head_b):
    """Pack one network's params into a single (C+1, Cin+1+K) array (fewer DMA descriptors)."""
    cin1 = conv_w.shape[1] + 1
    top = jnp.concatenate([conv_w, conv_b, head_w], axis=1)                       # (C, Cin+1+K)
    bot = jnp.concatenate([jnp.zeros((1, cin1), conv_w.dtype), head_b], axis=1)   # (1, Cin+1+K)
    return jnp.concatenate([top, bot], axis=0)


# ----------------------------------------------------------------------------
# DistillationWrapper (JAX port with deterministic synthetic parameters).
# ----------------------------------------------------------------------------
class DistillationWrapper:
    def __init__(self, key, cin=4, c_student=8, c_teacher=12, num_classes=16,
                 img_size=16):
        # cfg.DISTILLATION.* synthetic values
        self.enable_inter = True
        self.inter_transform_type = 'attention'
        self.student_idx = [0]
        self.teacher_idx = [0]
        self.enable_logit = True
        self.logit_standard = True
        self.scheduler = False
        self.temperature = 4.0
        self.teacher_img_size = img_size
        self.offline = False
        # NOTE: the original module gates the logit loss on `logit_standard or scheduler`
        # only (ENABLE_LOGIT is read from cfg but never consulted in guidance_loss).
        self._compute_logit = self.logit_standard or self.scheduler

        ks = jax.random.split(key, 8)
        sc = 0.1
        # student params (conv weights (Cout, Cin); conv bias (Cout, 1))
        self.s_conv_w = sc * jax.random.normal(ks[0], (c_student, cin), jnp.float32)
        self.s_conv_b = sc * jax.random.normal(ks[1], (c_student, 1), jnp.float32)
        self.s_head_w = sc * jax.random.normal(ks[2], (c_student, num_classes), jnp.float32)
        self.s_head_b = sc * jax.random.normal(ks[3], (1, num_classes), jnp.float32)
        # teacher params (frozen)
        self.t_conv_w = sc * jax.random.normal(ks[4], (c_teacher, cin), jnp.float32)
        self.t_conv_b = sc * jax.random.normal(ks[5], (c_teacher, 1), jnp.float32)
        self.t_head_w = sc * jax.random.normal(ks[6], (c_teacher, num_classes), jnp.float32)
        self.t_head_b = sc * jax.random.normal(ks[7], (1, num_classes), jnp.float32)

        # Pre-pack once; packed arrays are what the kernel consumes every step.
        self._pack_s = _pack_params(self.s_conv_w, self.s_conv_b, self.s_head_w, self.s_head_b)
        self._pack_t = _pack_params(self.t_conv_w, self.t_conv_b, self.t_head_w, self.t_head_b)

        self._fused_fn = jax.jit(partial(
            _distill_step,
            temperature=self.temperature,       # scheduler disabled -> static LOGIT_TEMP
            logit_standard=self.logit_standard,
            enable_inter=self.enable_inter,
            compute_logit=self._compute_logit))

        self._cache = None   # (x, logits, loss_inter, loss_logit)

    def forward(self, x):
        """Matches nn.Module.forward: returns student_model(x).

        Runs the single fused kernel (student + teacher + losses) and caches the
        losses so guidance_loss(x) is free — nothing intermediate touches HBM.
        """
        logits, li, ll = self._fused_fn(x, self._pack_s, self._pack_t)
        self._cache = (x, logits, li, ll)
        return logits

    def guidance_loss(self, x):
        # F.interpolate(x, teacher_img_size, bilinear) is the identity here (same size).
        # TODO(synk): bilinear resize path when teacher_img_size != input spatial size.
        # TODO(synk): 'similarity' / 'linear' inter transforms, OFFLINE feats, temperature scheduler.
        if self._cache is None or self._cache[0] is not x:
            _, li, ll = self._fused_fn(x, self._pack_s, self._pack_t)
        else:
            _, _, li, ll = self._cache
        loss_inter = li if self.enable_inter else jnp.float32(0.0)
        loss_logit = ll if self._compute_logit else jnp.float32(0.0)
        return loss_inter, loss_logit


# ----------------------------------------------------------------------------
# Pure-JAX reference (numerical sanity check).
# ----------------------------------------------------------------------------
def _ref_backbone(x, wc, bc, wh, bh):
    feat = jnp.maximum(jnp.einsum('nchw,oc->nohw', x, wc) + bc.reshape(1, -1, 1, 1), 0.0)
    pooled = jnp.mean(feat, axis=(2, 3))
    logits = pooled @ wh + bh[0]
    return logits, feat


def _ref_losses(m, x):
    ls, fs = _ref_backbone(x, m.s_conv_w, m.s_conv_b, m.s_head_w, m.s_head_b)
    lt, ft = _ref_backbone(x, m.t_conv_w, m.t_conv_b, m.t_head_w, m.t_head_b)

    def attn(f):
        a = jnp.mean(f * f, axis=1).reshape(f.shape[0], -1)
        return a / jnp.maximum(jnp.linalg.norm(a, axis=1, keepdims=True), 1e-12)

    loss_inter = jnp.mean((attn(ft) - attn(fs)) ** 2)

    def stdize(z):
        return (z - z.mean(-1, keepdims=True)) / (1e-7 + z.std(-1, keepdims=True, ddof=1))

    T = m.temperature
    zt, zs = stdize(lt) / T, stdize(ls) / T
    log_pt = jax.nn.log_softmax(zt, axis=1)
    log_ps = jax.nn.log_softmax(zs, axis=1)
    pt = jnp.exp(log_pt)
    loss_logit = jnp.mean(jnp.sum(pt * (log_pt - log_ps), axis=1)) * T * T
    return ls, loss_inter, loss_logit


if __name__ == "__main__":
    key = jax.random.PRNGKey(0)
    k_param, k_x = jax.random.split(key)

    # x: (N, C, H, W) = (2, 4, 16, 16), NCHW as in PyTorch.
    x = jax.random.normal(k_x, (2, 4, 16, 16), jnp.float32)

    wrapper = DistillationWrapper(k_param, cin=4, c_student=8, c_teacher=12,
                                  num_classes=16, img_size=16)

    logits = wrapper.forward(x)                       # == student_model(x)
    loss_inter, loss_logit = wrapper.guidance_loss(x)  # cached from the fused call

    jax.block_until_ready((logits, loss_inter, loss_logit))

    ref_logits, ref_inter, ref_logit = _ref_losses(wrapper, x)
    np.testing.assert_allclose(np.asarray(logits), np.asarray(ref_logits),
                               rtol=5e-2, atol=1e-4)
    np.testing.assert_allclose(float(loss_inter), float(ref_inter),
                               rtol=5e-2, atol=1e-5)
    np.testing.assert_allclose(float(loss_logit), float(ref_logit),
                               rtol=5e-2, atol=1e-4)

    print("KERNEL_OK")
</pallas_src>

<mosaic_0001>
module attributes {stable_mosaic.version = 11 : i64} {
  func.func @_distill_fused_kernel(%arg0: memref<5x512xf32, #tpu.memory_space<vmem>>, %arg1: memref<9x21xf32, #tpu.memory_space<vmem>>, %arg2: memref<13x21xf32, #tpu.memory_space<vmem>>, %arg3: memref<2x16xf32, #tpu.memory_space<vmem>>, %arg4: memref<1x1xf32, #tpu.memory_space<vmem>>, %arg5: memref<1x1xf32, #tpu.memory_space<vmem>>) attributes {dimension_semantics = [], scalar_prefetch = 0 : i64, scratch_operands = 0 : i64, tpu.core_type = #tpu.core_type<tc>} {
    %c0 = arith.constant 0 : index
    %c0_0 = arith.constant 0 : index
    %0 = vector.load %arg0[%c0, %c0_0] : memref<5x512xf32, #tpu.memory_space<vmem>>, vector<5x512xf32>
    %1 = tpu.iota {dimensions = array<i32: 0>} : vector<2x512xi32>
    %2 = tpu.iota {dimensions = array<i32: 1>} : vector<2x512xi32>
    %c256_i32 = arith.constant 256 : i32
    %3 = vector.broadcast %c256_i32 : i32 to vector<2x512xi32>
    %4 = arith.muli %1, %3 : vector<2x512xi32>
    %5 = arith.cmpi sge, %2, %4 : vector<2x512xi32>
    %c256_i32_1 = arith.constant 256 : i32
    %6 = vector.broadcast %c256_i32_1 : i32 to vector<2x512xi32>
    %7 = arith.addi %4, %6 : vector<2x512xi32>
    %8 = arith.cmpi slt, %2, %7 : vector<2x512xi32>
    %9 = arith.andi %5, %8 : vector<2x512xi1>
    %cst = arith.constant 3.906250e-03 : f32
    %cst_2 = arith.constant 0.000000e+00 : f32
    %10 = vector.broadcast %cst : f32 to vector<2x512xf32>
    %11 = vector.broadcast %cst_2 : f32 to vector<2x512xf32>
    %12 = arith.select %9, %10, %11 : vector<2x512xi1>, vector<2x512xf32>
    %c0_3 = arith.constant 0 : index
    %c0_4 = arith.constant 0 : index
    %13 = vector.load %arg1[%c0_3, %c0_4] : memref<9x21xf32, #tpu.memory_space<vmem>>, vector<9x21xf32>
    %14 = vector.extract_strided_slice %13 {offsets = [0, 0], sizes = [8, 5], strides = [1, 1]} : vector<9x21xf32> to vector<8x5xf32>
    %15 = vector.extract_strided_slice %13 {offsets = [0, 5], sizes = [8, 16], strides = [1, 1]} : vector<9x21xf32> to vector<8x16xf32>
    %16 = vector.extract_strided_slice %13 {offsets = [8, 5], sizes = [1, 16], strides = [1, 1]} : vector<9x21xf32> to vector<1x16xf32>
    %cst_5 = arith.constant dense<0.000000e+00> : vector<8x512xf32>
    %17 = tpu.matmul %14, %0, %cst_5 {dimension_numbers = #tpu.dot_dimension_numbers<[1], [0], [0], [1], [0, 0, 1, 1], [], []>} : vector<8x5xf32>, vector<5x512xf32>, vector<8x512xf32> -> vector<8x512xf32>
    %cst_6 = arith.constant 0.000000e+00 : f32
    %18 = vector.broadcast %cst_6 : f32 to vector<8x512xf32>
    %19 = arith.maximumf %17, %18 : vector<8x512xf32>
    %cst_7 = arith.constant dense<0.000000e+00> : vector<2x8xf32>
    %20 = tpu.matmul %12, %19, %cst_7 {dimension_numbers = #tpu.dot_dimension_numbers<[1], [1], [0], [0], [0, 0, 1, 0], [], []>} : vector<2x512xf32>, vector<8x512xf32>, vector<2x8xf32> -> vector<2x8xf32>
    %cst_8 = arith.constant dense<0.000000e+00> : vector<2x16xf32>
    %21 = tpu.matmul %20, %15, %cst_8 {dimension_numbers = #tpu.dot_dimension_numbers<[1], [0], [0], [1], [0, 0, 1, 1], [], []>} : vector<2x8xf32>, vector<8x16xf32>, vector<2x16xf32> -> vector<2x16xf32>
    %22 = vector.broadcast %16 : vector<1x16xf32> to vector<2x16xf32>
    %23 = arith.addf %21, %22 : vector<2x16xf32>
    %c0_9 = arith.constant 0 : index
    %c0_10 = arith.constant 0 : index
    %24 = vector.load %arg2[%c0_9, %c0_10] : memref<13x21xf32, #tpu.memory_space<vmem>>, vector<13x21xf32>
    %25 = vector.extract_strided_slice %24 {offsets = [0, 0], sizes = [12, 5], strides = [1, 1]} : vector<13x21xf32> to vector<12x5xf32>
    %26 = vector.extract_strided_slice %24 {offsets = [0, 5], sizes = [12, 16], strides = [1, 1]} : vector<13x21xf32> to vector<12x16xf32>
    %27 = vector.extract_strided_slice %24 {offsets = [12, 5], sizes = [1, 16], strides = [1, 1]} : vector<13x21xf32> to vector<1x16xf32>
    %cst_11 = arith.constant dense<0.000000e+00> : vector<12x512xf32>
    %28 = tpu.matmul %25, %0, %cst_11 {dimension_numbers = #tpu.dot_dimension_numbers<[1], [0], [0], [1], [0, 0, 1, 1], [], []>} : vector<12x5xf32>, vector<5x512xf32>, vector<12x512xf32> -> vector<12x512xf32>
    %cst_12 = arith.constant 0.000000e+00 : f32
    %29 = vector.broadcast %cst_12 : f32 to vector<12x512xf32>
    %30 = arith.maximumf %28, %29 : vector<12x512xf32>
    %cst_13 = arith.constant dense<0.000000e+00> : vector<2x12xf32>
    %31 = tpu.matmul %12, %30, %cst_13 {dimension_numbers = #tpu.dot_dimension_numbers<[1], [1], [0], [0], [0, 0, 1, 0], [], []>} : vector<2x512xf32>, vector<12x512xf32>, vector<2x12xf32> -> vector<2x12xf32>
    %cst_14 = arith.constant dense<0.000000e+00> : vector<2x16xf32>
    %32 = tpu.matmul %31, %26, %cst_14 {dimension_numbers = #tpu.dot_dimension_numbers<[1], [0], [0], [1], [0, 0, 1, 1], [], []>} : vector<2x12xf32>, vector<12x16xf32>, vector<2x16xf32> -> vector<2x16xf32>
    %33 = vector.broadcast %27 : vector<1x16xf32> to vector<2x16xf32>
    %34 = arith.addf %32, %33 : vector<2x16xf32>
    %c0_15 = arith.constant 0 : index
    %c0_16 = arith.constant 0 : index
    %35 = vector.load %arg3[%c0_15, %c0_16] : memref<2x16xf32, #tpu.memory_space<vmem>>, vector<2x16xf32>
    tpu.vector_store %arg3[%c0_15, %c0_16], %23 {strides = array<i32>} : memref<2x16xf32, #tpu.memory_space<vmem>>, vector<2x16xf32>,
    %36 = arith.mulf %19, %19 : vector<8x512xf32>
    %cst_17 = arith.constant dense<0.000000e+00> : vector<512xf32>
    %37 = vector.multi_reduction <add>, %36, %cst_17 [0] : vector<8x512xf32> to vector<512xf32>
    %38 = vector.shape_cast %37 : vector<512xf32> to vector<1x512xf32>
    %cst_18 = arith.constant 1.250000e-01 : f32
    %39 = vector.broadcast %cst_18 : f32 to vector<1x512xf32>
    %40 = arith.mulf %38, %39 : vector<1x512xf32>
    %41 = arith.mulf %30, %30 : vector<12x512xf32>
    %cst_19 = arith.constant dense<0.000000e+00> : vector<512xf32>
    %42 = vector.multi_reduction <add>, %41, %cst_19 [0] : vector<12x512xf32> to vector<512xf32>
    %43 = vector.shape_cast %42 : vector<512xf32> to vector<1x512xf32>
    %cst_20 = arith.constant 0.0833333358 : f32
    %44 = vector.broadcast %cst_20 : f32 to vector<1x512xf32>
    %45 = arith.mulf %43, %44 : vector<1x512xf32>
    %cst_21 = arith.constant 0.000000e+00 : f32
    %46 = vector.broadcast %cst_21 : f32 to vector<1x1xf32>
    %47 = vector.extract_strided_slice %40 {offsets = [0, 0], sizes = [1, 256], strides = [1, 1]} : vector<1x512xf32> to vector<1x256xf32>
    %48 = vector.extract_strided_slice %45 {offsets = [0, 0], sizes = [1, 256], strides = [1, 1]} : vector<1x512xf32> to vector<1x256xf32>
    %49 = arith.mulf %47, %47 : vector<1x256xf32>
    %cst_22 = arith.constant dense<0.000000e+00> : vector<1xf32>
    %50 = vector.multi_reduction <add>, %49, %cst_22 [1] : vector<1x256xf32> to vector<1xf32>
    %51 = vector.shape_cast %50 : vector<1xf32> to vector<1x1xf32>
    %cst_23 = arith.constant 1.000000e-24 : f32
    %52 = vector.broadcast %cst_23 : f32 to vector<1x1xf32>
    %53 = arith.maximumf %51, %52 : vector<1x1xf32>
    %54 = math.rsqrt %53 : vector<1x1xf32>
    %55 = vector.broadcast %54 : vector<1x1xf32> to vector<1x256xf32>
    %56 = arith.mulf %47, %55 : vector<1x256xf32>
    %57 = arith.mulf %48, %48 : vector<1x256xf32>
    %cst_24 = arith.constant dense<0.000000e+00> : vector<1xf32>
    %58 = vector.multi_reduction <add>, %57, %cst_24 [1] : vector<1x256xf32> to vector<1xf32>
    %59 = vector.shape_cast %58 : vector<1xf32> to vector<1x1xf32>
    %cst_25 = arith.constant 1.000000e-24 : f32
    %60 = vector.broadcast %cst_25 : f32 to vector<1x1xf32>
    %61 = arith.maximumf %59, %60 : vector<1x1xf32>
    %62 = math.rsqrt %61 : vector<1x1xf32>
    %63 = vector.broadcast %62 : vector<1x1xf32> to vector<1x256xf32>
    %64 = arith.mulf %48, %63 : vector<1x256xf32>
    %65 = arith.subf %64, %56 : vector<1x256xf32>
    %66 = arith.mulf %65, %65 : vector<1x256xf32>
    %cst_26 = arith.constant dense<0.000000e+00> : vector<1xf32>
    %67 = vector.multi_reduction <add>, %66, %cst_26 [1] : vector<1x256xf32> to vector<1xf32>
    %68 = vector.shape_cast %67 : vector<1xf32> to vector<1x1xf32>
    %69 = arith.addf %46, %68 : vector<1x1xf32>
    %70 = vector.extract_strided_slice %40 {offsets = [0, 256], sizes = [1, 256], strides = [1, 1]} : vector<1x512xf32> to vector<1x256xf32>
    %71 = vector.extract_strided_slice %45 {offsets = [0, 256], sizes = [1, 256], strides = [1, 1]} : vector<1x512xf32> to vector<1x256xf32>
    %72 = arith.mulf %70, %70 : vector<1x256xf32>
    %cst_27 = arith.constant dense<0.000000e+00> : vector<1xf32>
    %73 = vector.multi_reduction <add>, %72, %cst_27 [1] : vector<1x256xf32> to vector<1xf32>
    %74 = vector.shape_cast %73 : vector<1xf32> to vector<1x1xf32>
    %cst_28 = arith.constant 1.000000e-24 : f32
    %75 = vector.broadcast %cst_28 : f32 to vector<1x1xf32>
    %76 = arith.maximumf %74, %75 : vector<1x1xf32>
    %77 = math.rsqrt %76 : vector<1x1xf32>
    %78 = vector.broadcast %77 : vector<1x1xf32> to vector<1x256xf32>
    %79 = arith.mulf %70, %78 : vector<1x256xf32>
    %80 = arith.mulf %71, %71 : vector<1x256xf32>
    %cst_29 = arith.constant dense<0.000000e+00> : vector<1xf32>
    %81 = vector.multi_reduction <add>, %80, %cst_29 [1] : vector<1x256xf32> to vector<1xf32>
    %82 = vector.shape_cast %81 : vector<1xf32> to vector<1x1xf32>
    %cst_30 = arith.constant 1.000000e-24 : f32
    %83 = vector.broadcast %cst_30 : f32 to vector<1x1xf32>
    %84 = arith.maximumf %82, %83 : vector<1x1xf32>
    %85 = math.rsqrt %84 : vector<1x1xf32>
    %86 = vector.broadcast %85 : vector<1x1xf32> to vector<1x256xf32>
    %87 = arith.mulf %71, %86 : vector<1x256xf32>
    %88 = arith.subf %87, %79 : vector<1x256xf32>
    %89 = arith.mulf %88, %88 : vector<1x256xf32>
    %cst_31 = arith.constant dense<0.000000e+00> : vector<1xf32>
    %90 = vector.multi_reduction <add>, %89, %cst_31 [1] : vector<1x256xf32> to vector<1xf32>
    %91 = vector.shape_cast %90 : vector<1xf32> to vector<1x1xf32>
    %92 = arith.addf %69, %91 : vector<1x1xf32>
    %cst_32 = arith.constant 0.001953125 : f32
    %93 = vector.broadcast %cst_32 : f32 to vector<1x1xf32>
    %94 = arith.mulf %92, %93 : vector<1x1xf32>
    %c0_33 = arith.constant 0 : index
    %c0_34 = arith.constant 0 : index
    %95 = vector.load %arg4[%c0_33, %c0_34] : memref<1x1xf32, #tpu.memory_space<vmem>>, vector<1x1xf32>
    tpu.vector_store %arg4[%c0_33, %c0_34], %94 {strides = array<i32>} : memref<1x1xf32, #tpu.memory_space<vmem>>, vector<1x1xf32>,
    %cst_35 = arith.constant dense<0.000000e+00> : vector<2xf32>
    %96 = vector.multi_reduction <add>, %23, %cst_35 [1] : vector<2x16xf32> to vector<2xf32>
    %97 = vector.shape_cast %96 : vector<2xf32> to vector<2x1xf32>
    %cst_36 = arith.constant 1.600000e+01 : f32
    %98 = vector.broadcast %cst_36 : f32 to vector<2x1xf32>
    %99 = arith.divf %97, %98 : vector<2x1xf32>
    %100 = vector.broadcast %99 : vector<2x1xf32> to vector<2x16xf32>
    %101 = arith.subf %23, %100 : vector<2x16xf32>
    %102 = vector.broadcast %99 : vector<2x1xf32> to vector<2x16xf32>
    %103 = arith.subf %23, %102 : vector<2x16xf32>
    %104 = arith.mulf %101, %103 : vector<2x16xf32>
    %cst_37 = arith.constant dense<0.000000e+00> : vector<2xf32>
    %105 = vector.multi_reduction <add>, %104, %cst_37 [1] : vector<2x16xf32> to vector<2xf32>
    %106 = vector.shape_cast %105 : vector<2xf32> to vector<2x1xf32>
    %cst_38 = arith.constant 0.0666666701 : f32
    %107 = vector.broadcast %cst_38 : f32 to vector<2x1xf32>
    %108 = arith.mulf %106, %107 : vector<2x1xf32>
    %109 = vector.broadcast %99 : vector<2x1xf32> to vector<2x16xf32>
    %110 = arith.subf %23, %109 : vector<2x16xf32>
    %111 = math.sqrt %108 : vector<2x1xf32>
    %cst_39 = arith.constant 1.000000e-07 : f32
    %112 = vector.broadcast %cst_39 : f32 to vector<2x1xf32>
    %113 = arith.addf %112, %111 : vector<2x1xf32>
    %114 = vector.broadcast %113 : vector<2x1xf32> to vector<2x16xf32>
    %115 = arith.divf %110, %114 : vector<2x16xf32>
    %cst_40 = arith.constant 2.500000e-01 : f32
    %116 = vector.broadcast %cst_40 : f32 to vector<2x16xf32>
    %117 = arith.mulf %115, %116 : vector<2x16xf32>
    %cst_41 = arith.constant dense<0.000000e+00> : vector<2xf32>
    %118 = vector.multi_reduction <add>, %34, %cst_41 [1] : vector<2x16xf32> to vector<2xf32>
    %119 = vector.shape_cast %118 : vector<2xf32> to vector<2x1xf32>
    %cst_42 = arith.constant 1.600000e+01 : f32
    %120 = vector.broadcast %cst_42 : f32 to vector<2x1xf32>
    %121 = arith.divf %119, %120 : vector<2x1xf32>
    %122 = vector.broadcast %121 : vector<2x1xf32> to vector<2x16xf32>
    %123 = arith.subf %34, %122 : vector<2x16xf32>
    %124 = vector.broadcast %121 : vector<2x1xf32> to vector<2x16xf32>
    %125 = arith.subf %34, %124 : vector<2x16xf32>
    %126 = arith.mulf %123, %125 : vector<2x16xf32>
    %cst_43 = arith.constant dense<0.000000e+00> : vector<2xf32>
    %127 = vector.multi_reduction <add>, %126, %cst_43 [1] : vector<2x16xf32> to vector<2xf32>
    %128 = vector.shape_cast %127 : vector<2xf32> to vector<2x1xf32>
    %cst_44 = arith.constant 0.0666666701 : f32
    %129 = vector.broadcast %cst_44 : f32 to vector<2x1xf32>
    %130 = arith.mulf %128, %129 : vector<2x1xf32>
    %131 = vector.broadcast %121 : vector<2x1xf32> to vector<2x16xf32>
    %132 = arith.subf %34, %131 : vector<2x16xf32>
    %133 = math.sqrt %130 : vector<2x1xf32>
    %cst_45 = arith.constant 1.000000e-07 : f32
    %134 = vector.broadcast %cst_45 : f32 to vector<2x1xf32>
    %135 = arith.addf %134, %133 : vector<2x1xf32>
    %136 = vector.broadcast %135 : vector<2x1xf32> to vector<2x16xf32>
    %137 = arith.divf %132, %136 : vector<2x16xf32>
    %cst_46 = arith.constant 2.500000e-01 : f32
    %138 = vector.broadcast %cst_46 : f32 to vector<2x16xf32>
    %139 = arith.mulf %137, %138 : vector<2x16xf32>
    %cst_47 = arith.constant dense<0xFF800000> : vector<2xf32>
    %140 = vector.multi_reduction <maximumf>, %117, %cst_47 [1] : vector<2x16xf32> to vector<2xf32>
    %141 = vector.shape_cast %140 : vector<2xf32> to vector<2x1xf32>
    %142 = vector.broadcast %141 : vector<2x1xf32> to vector<2x16xf32>
    %143 = arith.subf %117, %142 : vector<2x16xf32>
    %144 = math.exp %143 : vector<2x16xf32>
    %cst_48 = arith.constant dense<0.000000e+00> : vector<2xf32>
    %145 = vector.multi_reduction <add>, %144, %cst_48 [1] : vector<2x16xf32> to vector<2xf32>
    %146 = vector.shape_cast %145 : vector<2xf32> to vector<2x1xf32>
    %147 = math.log %146 : vector<2x1xf32>
    %148 = vector.broadcast %147 : vector<2x1xf32> to vector<2x16xf32>
    %149 = arith.subf %143, %148 : vector<2x16xf32>
    %cst_49 = arith.constant dense<0xFF800000> : vector<2xf32>
    %150 = vector.multi_reduction <maximumf>, %139, %cst_49 [1] : vector<2x16xf32> to vector<2xf32>
    %151 = vector.shape_cast %150 : vector<2xf32> to vector<2x1xf32>
    %152 = vector.broadcast %151 : vector<2x1xf32> to vector<2x16xf32>
    %153 = arith.subf %139, %152 : vector<2x16xf32>
    %154 = math.exp %153 : vector<2x16xf32>
    %cst_50 = arith.constant dense<0.000000e+00> : vector<2xf32>
    %155 = vector.multi_reduction <add>, %154, %cst_50 [1] : vector<2x16xf32> to vector<2xf32>
    %156 = vector.shape_cast %155 : vector<2xf32> to vector<2x1xf32>
    %157 = math.log %156 : vector<2x1xf32>
    %158 = vector.broadcast %157 : vector<2x1xf32> to vector<2x16xf32>
    %159 = arith.subf %153, %158 : vector<2x16xf32>
    %160 = math.exp %159 : vector<2x16xf32>
    %161 = arith.subf %159, %149 : vector<2x16xf32>
    %162 = arith.mulf %160, %161 : vector<2x16xf32>
    %cst_51 = arith.constant dense<0.000000e+00> : vector<2xf32>
    %163 = vector.multi_reduction <add>, %162, %cst_51 [1] : vector<2x16xf32> to vector<2xf32>
    %164 = vector.shape_cast %163 : vector<2xf32> to vector<2x1xf32>
    %cst_52 = arith.constant dense<0.000000e+00> : vector<1xf32>
    %165 = vector.multi_reduction <add>, %164, %cst_52 [0] : vector<2x1xf32> to vector<1xf32>
    %166 = vector.shape_cast %165 : vector<1xf32> to vector<1x1xf32>
    %cst_53 = arith.constant 8.000000e+00 : f32
    %167 = vector.broadcast %cst_53 : f32 to vector<1x1xf32>
    %168 = arith.mulf %166, %167 : vector<1x1xf32>
    %c0_54 = arith.constant 0 : index
    %c0_55 = arith.constant 0 : index
    %169 = vector.load %arg5[%c0_54, %c0_55] : memref<1x1xf32, #tpu.memory_space<vmem>>, vector<1x1xf32>
    tpu.vector_store %arg5[%c0_54, %c0_55], %168 {strides = array<i32>} : memref<1x1xf32, #tpu.memory_space<vmem>>, vector<1x1xf32>,
    return
  }
}

</mosaic_0001>

<llo_original>
// kernel: _distill_step.1
$region0: #{_distill_step.1}
  #allocation0 [shape = 'u32[]', space=smem, size = 0x4, offset = 0x4, fixed_abs, tag = 'smem constant byte address 0x4 - core index']
  #allocation1 [shape = 'u32[144,128]{1,0:T(1,128)}', space=vmem, size = 0x12000, scoped, tag = 'internal scratch']
  %s0 = inlined_call_operand.vmem [shape: f32[5,512], index: 0, kind: input, shape index: {}]
  %s1 = inlined_call_operand.vmem [shape: f32[9,21], index: 1, kind: input, shape index: {}]
  %s2 = inlined_call_operand.vmem [shape: f32[13,21], index: 2, kind: input, shape index: {}]
  %s3 = inlined_call_operand.hbm [shape: f32[2,16], index: 3, kind: output, shape index: {0}]
  %s4 = inlined_call_operand.hbm [shape: f32[1,1], index: 4, kind: output, shape index: {1}]
  %s5 = inlined_call_operand.hbm [shape: f32[1,1], index: 5, kind: output, shape index: {2}]
  %6 = xla_tuple %s3, %s4, %s5
  %s7 = sld [smem:[#allocation0]]
  $region38: #{_distill_step.1} parent=0
    _
  %s9 = ssub.s32 1, %s7
  %s10 = scalar_select 0, %s9, %s7
  $region1: #{_distill_step.1} parent=0
    #allocation2 [shape = 'u8[1024]{0}', space=vmem, size = 0x400, scoped, tag = 'output window, operand 0, single buffered']
    #allocation3 [shape = 's32[1]{0}', space=sflag, size = 0x4, scoped, tag = 'scoped memory for _distill_step.1']
    #allocation4 [shape = 'u8[512]{0}', space=vmem, size = 0x400, scoped, tag = 'output window, operand 1, single buffered']
    #allocation5 [shape = 's32[1]{0}', space=sflag, size = 0x4, scoped, tag = 'scoped memory for _distill_step.1']
    #allocation6 [shape = 'u8[512]{0}', space=vmem, size = 0x400, scoped, tag = 'output window, operand 2, single buffered']
    %11 = vsyncpa [#allocation3], 0
    %12 = vsyncpa [#allocation5], 0
    // Predicated region
    $region2: #{_distill_step.1} parent=1 // pred_check
      _
    $region3: #{_distill_step.1} parent=1 // pred_check_branch
      %14 = sbr.rel (0) target = $region5
    $region4: #{_distill_step.1} parent=1 // pred_region
      _
    $region5: #{_distill_step.1} parent=1 // pred_fallthru
      _
    // Predicated region
    $region6: #{_distill_step.1} parent=1 // pred_check
      _
    $region7: #{_distill_step.1} parent=1 // pred_check_branch
      %16 = sbr.rel (0) target = $region9
    $region8: #{_distill_step.1} parent=1 // pred_region
      _
    $region9: #{_distill_step.1} parent=1 // pred_fallthru
      _
    // Predicated region
    $region10: #{_distill_step.1} parent=1 // pred_check
      _
    $region11: #{_distill_step.1} parent=1 // pred_check_branch
      %18 = sbr.rel (0) target = $region13
    $region12: #{_distill_step.1} parent=1 // pred_region
      _
    $region13: #{_distill_step.1} parent=1 // pred_fallthru
      _
    %v19 = vld [vmem:[%s0] sm:$0x1f]
    %v20 = vld [vmem:[%s0 + $0x8] sm:$0x1f]
    %v21 = vld [vmem:[%s0 + $0x10] sm:$0x1f]
    %v22 = vld [vmem:[%s0 + $0x18] sm:$0x1f]
    %v23 = vlaneseq
    %v24 = vshrl.u32 %v23, 7
    %v25 = vlaneseq
    %v26 = vand.u32 %v25, 127
    %v27 = vadd.s32 %v26, 128
    %v28 = vadd.s32 %v26, 256
    %v29 = vadd.s32 %v26, 384
    %v30 = vmul.u32 %v24, 256
    %vm31 = vcmp.ge.s32.totalorder %v26, %v30
    %vm32 = vcmp.ge.s32.totalorder %v27, %v30
    %vm33 = vcmp.ge.s32.totalorder %v28, %v30
    %vm34 = vcmp.ge.s32.totalorder %v29, %v30
    %v35 = vadd.s32 %v30, 256
    %vm36 = vcmp.lt.s32.totalorder %v26, %v35
    %vm37 = vcmp.lt.s32.totalorder %v27, %v35
    %vm38 = vcmp.lt.s32.totalorder %v28, %v35
    %vm39 = vcmp.lt.s32.totalorder %v29, %v35
    %vm40 = vmand %vm31, %vm36
    %vm41 = vmand %vm32, %vm37
    %vm42 = vmand %vm33, %vm38
    %vm43 = vmand %vm34, %vm39
    %v44 = vsel %vm40, 0.00390625, 0.0
    %v45 = vsel %vm41, 0.00390625, 0.0
    %v46 = vsel %vm42, 0.00390625, 0.0
    %v47 = vsel %vm43, 0.00390625, 0.0
    %v48 = vld [vmem:[%s1] sm:$0xff]
    %v49 = vld [vmem:[%s1 + $0x8] sm:$0x1]
    %vm50 = vcmask 39936
    %v52 = vsel %vm50, %v48, 0
    %vm54 = vcmask 1044480
    %v56 = vsel %vm54, %v19, 0
    %v59 = vsel %vm54, %v20, 0
    %v62 = vsel %vm54, %v21, 0
    %v65 = vsel %vm54, %v22, 0
    %67 = vmatprep.subr.mxu0 %v59
    %68 = vmatpush1.msra.mxu0 %v56
    %69 = vmatprep.subr.mxu0 0.0
    %70 = vmatpush1.msra.mxu0 0.0
    %71 = vmatprep.subr.mxu0 0.0
    %72 = vmatpush1.msra.mxu0 0.0
    %73 = vmatprep.subr.mxu0 0.0
    %74 = vmatpush1.msra.mxu0 0.0
    %75 = vmatprep.subr.mxu0 0.0
    %76 = vmatpush1.msra.mxu0 0.0
    %77 = vmatprep.subr.mxu0 0.0
    %78 = vmatpush1.msra.mxu0 0.0
    %79 = vmatprep.subr.mxu0 0.0
    %80 = vmatpush1.msra.mxu0 0.0
    %81 = vmatprep.subr.mxu0 0.0
    %82 = vmatpush1.msra.mxu0 0.0
    %83 = vmatprep.subr.mxu0 0.0
    %84 = vmatpush1.msra.mxu0 0.0
    %85 = vmatprep.subr.mxu0 0.0
    %86 = vmatpush1.msra.mxu0 0.0
    %87 = vmatprep.subr.mxu0 0.0
    %88 = vmatpush1.msra.mxu0 0.0
    %89 = vmatprep.subr.mxu0 0.0
    %90 = vmatpush1.msra.mxu0 0.0
    %91 = vmatprep.subr.mxu0 0.0
    %92 = vmatpush1.msra.mxu0 0.0
    %93 = vmatprep.subr.mxu0 0.0
    %94 = vmatpush1.msra.mxu0 0.0
    %95 = vmatprep.subr.mxu0 0.0
    %96 = vmatpush1.msra.mxu0 0.0
    %97 = vmatprep.subr.mxu0 0.0
    %98 = vmatpush1.msra.mxu0 0.0
    %99 = vmatprep.subr.mxu0 0.0
    %100 = vmatpush1.msra.mxu0 0.0
    %101 = vmatprep.subr.mxu0 0.0
    %102 = vmatpush1.msra.mxu0 0.0
    %103 = vmatprep.subr.mxu0 0.0
    %104 = vmatpush1.msra.mxu0 0.0
    %105 = vmatprep.subr.mxu0 0.0
    %106 = vmatpush1.msra.mxu0 0.0
    %107 = vmatprep.subr.mxu0 0.0
    %108 = vmatpush1.msra.mxu0 0.0
    %109 = vmatprep.subr.mxu0 0.0
    %110 = vmatpush1.msra.mxu0 0.0
    %111 = vmatprep.subr.mxu0 0.0
    %112 = vmatpush1.msra.mxu0 0.0
    %113 = vmatprep.subr.mxu0 0.0
    %114 = vmatpush1.msra.mxu0 0.0
    %115 = vmatprep.subr.mxu0 0.0
    %116 = vmatpush1.msra.mxu0 0.0
    %117 = vmatprep.subr.mxu0 0.0
    %118 = vmatpush1.msra.mxu0 0.0
    %119 = vmatprep.subr.mxu0 0.0
    %120 = vmatpush1.msra.mxu0 0.0
    %121 = vmatprep.subr.mxu0 0.0
    %122 = vmatpush1.msra.mxu0 0.0
    %123 = vmatprep.subr.mxu0 0.0
    %124 = vmatpush1.msra.mxu0 0.0
    %125 = vmatprep.subr.mxu0 0.0
    %126 = vmatpush1.msra.mxu0 0.0
    %127 = vmatprep.subr.mxu0 0.0
    %128 = vmatpush1.msra.mxu0 0.0
    %129 = vmatprep.subr.mxu0 0.0
    %130 = vmatpush1.msra.mxu0 0.0
    %131 = vmatprep.mubr.f32.mxu0 0.0
    %132 = vmatmul.mubr.f32.gmra.mrb[0].mxu0 %v52
    %v133 = vpop.f32.mrb[0].mxu0
    %v134 = vadd.f32 0.0, %v133
    %v135 = vpop.f32.mrb[0].mxu0
    %v136 = vadd.f32 0.0, %v135
    %137 = vdwg.mxu0
    %138 = vmatprep.subr.mxu0 %v65
    %139 = vmatpush1.msra.mxu0 %v62
    %140 = vmatprep.subr.mxu0 0.0
    %141 = vmatpush1.msra.mxu0 0.0
    %142 = vmatprep.subr.mxu0 0.0
    %143 = vmatpush1.msra.mxu0 0.0
    %144 = vmatprep.subr.mxu0 0.0
    %145 = vmatpush1.msra.mxu0 0.0
    %146 = vmatprep.subr.mxu0 0.0
    %147 = vmatpush1.msra.mxu0 0.0
    %148 = vmatprep.subr.mxu0 0.0
    %149 = vmatpush1.msra.mxu0 0.0
    %150 = vmatprep.subr.mxu0 0.0
    %151 = vmatpush1.msra.mxu0 0.0
    %152 = vmatprep.subr.mxu0 0.0
    %153 = vmatpush1.msra.mxu0 0.0
    %154 = vmatprep.subr.mxu0 0.0
    %155 = vmatpush1.msra.mxu0 0.0
    %156 = vmatprep.subr.mxu0 0.0
    %157 = vmatpush1.msra.mxu0 0.0
    %158 = vmatprep.subr.mxu0 0.0
    %159 = vmatpush1.msra.mxu0 0.0
    %160 = vmatprep.subr.mxu0 0.0
    %161 = vmatpush1.msra.mxu0 0.0
    %162 = vmatprep.subr.mxu0 0.0
    %163 = vmatpush1.msra.mxu0 0.0
    %164 = vmatprep.subr.mxu0 0.0
    %165 = vmatpush1.msra.mxu0 0.0
    %166 = vmatprep.subr.mxu0 0.0
    %167 = vmatpush1.msra.mxu0 0.0
    %168 = vmatprep.subr.mxu0 0.0
    %169 = vmatpush1.msra.mxu0 0.0
    %170 = vmatprep.subr.mxu0 0.0
    %171 = vmatpush1.msra.mxu0 0.0
    %172 = vmatprep.subr.mxu0 0.0
    %173 = vmatpush1.msra.mxu0 0.0
    %174 = vmatprep.subr.mxu0 0.0
    %175 = vmatpush1.msra.mxu0 0.0
    %176 = vmatprep.subr.mxu0 0.0
    %177 = vmatpush1.msra.mxu0 0.0
    %178 = vmatprep.subr.mxu0 0.0
    %179 = vmatpush1.msra.mxu0 0.0
    %180 = vmatprep.subr.mxu0 0.0
    %181 = vmatpush1.msra.mxu0 0.0
    %182 = vmatprep.subr.mxu0 0.0
    %183 = vmatpush1.msra.mxu0 0.0
    %184 = vmatprep.subr.mxu0 0.0
    %185 = vmatpush1.msra.mxu0 0.0
    %186 = vmatprep.subr.mxu0 0.0
    %187 = vmatpush1.msra.mxu0 0.0
    %188 = vmatprep.subr.mxu0 0.0
    %189 = vmatpush1.msra.mxu0 0.0
    %190 = vmatprep.subr.mxu0 0.0
    %191 = vmatpush1.msra.mxu0 0.0
    %192 = vmatprep.subr.mxu0 0.0
    %193 = vmatpush1.msra.mxu0 0.0
    %194 = vmatprep.subr.mxu0 0.0
    %195 = vmatpush1.msra.mxu0 0.0
    %196 = vmatprep.subr.mxu0 0.0
    %197 = vmatpush1.msra.mxu0 0.0
    %198 = vmatprep.subr.mxu0 0.0
    %199 = vmatpush1.msra.mxu0 0.0
    %200 = vmatprep.subr.mxu0 0.0
    %201 = vmatpush1.msra.mxu0 0.0
    %202 = vmatprep.mubr.f32.mxu0 0.0
    %203 = vmatmul.mubr.f32.gmra.mrb[0].mxu0 %v52
    %v204 = vpop.f32.mrb[0].mxu0
    %v205 = vadd.f32 0.0, %v204
    %v206 = vpop.f32.mrb[0].mxu0
    %v207 = vadd.f32 0.0, %v206
    %208 = vdwg.mxu0
    %v209 = vmax.f32 %v134, 0.0
    %v210 = vmax.f32 %v136, 0.0
    %v211 = vmax.f32 %v205, 0.0
    %v212 = vmax.f32 %v207, 0.0
    %213 = vmatprep.subr.mxu0 %v210
    %214 = vmatpush1.xpose.msra.mxu0 %v209
    %215 = vmatprep.subr.mxu0 0.0
    %216 = vmatpush1.xpose.msra.mxu0 0.0
    %217 = vmatprep.subr.mxu0 0.0
    %218 = vmatpush1.xpose.msra.mxu0 0.0
    %219 = vmatprep.subr.mxu0 0.0
    %220 = vmatpush1.xpose.msra.mxu0 0.0
    %221 = vmatprep.subr.mxu0 0.0
    %222 = vmatpush1.xpose.msra.mxu0 0.0
    %223 = vmatprep.subr.mxu0 0.0
    %224 = vmatpush1.xpose.msra.mxu0 0.0
    %225 = vmatprep.subr.mxu0 0.0
    %226 = vmatpush1.xpose.msra.mxu0 0.0
    %227 = vmatprep.subr.mxu0 0.0
    %228 = vmatpush1.xpose.msra.mxu0 0.0
    %229 = vmatprep.subr.mxu0 0.0
    %230 = vmatpush1.xpose.msra.mxu0 0.0
    %231 = vmatprep.subr.mxu0 0.0
    %232 = vmatpush1.xpose.msra.mxu0 0.0
    %233 = vmatprep.subr.mxu0 0.0
    %234 = vmatpush1.xpose.msra.mxu0 0.0
    %235 = vmatprep.subr.mxu0 0.0
    %236 = vmatpush1.xpose.msra.mxu0 0.0
    %237 = vmatprep.subr.mxu0 0.0
    %238 = vmatpush1.xpose.msra.mxu0 0.0
    %239 = vmatprep.subr.mxu0 0.0
    %240 = vmatpush1.xpose.msra.mxu0 0.0
    %241 = vmatprep.subr.mxu0 0.0
    %242 = vmatpush1.xpose.msra.mxu0 0.0
    %243 = vmatprep.subr.mxu0 0.0
    %244 = vmatpush1.xpose.msra.mxu0 0.0
    %245 = vmatprep.subr.mxu0 0.0
    %246 = vmatpush1.xpose.msra.mxu0 0.0
    %247 = vmatprep.subr.mxu0 0.0
    %248 = vmatpush1.xpose.msra.mxu0 0.0
    %249 = vmatprep.subr.mxu0 0.0
    %250 = vmatpush1.xpose.msra.mxu0 0.0
    %251 = vmatprep.subr.mxu0 0.0
    %252 = vmatpush1.xpose.msra.mxu0 0.0
    %253 = vmatprep.subr.mxu0 0.0
    %254 = vmatpush1.xpose.msra.mxu0 0.0
    %255 = vmatprep.subr.mxu0 0.0
    %256 = vmatpush1.xpose.msra.mxu0 0.0
    %257 = vmatprep.subr.mxu0 0.0
    %258 = vmatpush1.xpose.msra.mxu0 0.0
    %259 = vmatprep.subr.mxu0 0.0
    %260 = vmatpush1.xpose.msra.mxu0 0.0
    %261 = vmatprep.subr.mxu0 0.0
    %262 = vmatpush1.xpose.msra.mxu0 0.0
    %263 = vmatprep.subr.mxu0 0.0
    %264 = vmatpush1.xpose.msra.mxu0 0.0
    %265 = vmatprep.subr.mxu0 0.0
    %266 = vmatpush1.xpose.msra.mxu0 0.0
    %267 = vmatprep.subr.mxu0 0.0
    %268 = vmatpush1.xpose.msra.mxu0 0.0
    %269 = vmatprep.subr.mxu0 0.0
    %270 = vmatpush1.xpose.msra.mxu0 0.0
    %271 = vmatprep.subr.mxu0 0.0
    %272 = vmatpush1.xpose.msra.mxu0 0.0
    %273 = vmatprep.subr.mxu0 0.0
    %274 = vmatpush1.xpose.msra.mxu0 0.0
    %275 = vmatprep.subr.mxu0 0.0
    %276 = vmatpush1.xpose.msra.mxu0 0.0
    %277 = vmatprep.mubr.f32.mxu0 %v45
    %278 = vmatmul.mubr.f32.gmra.mrb[0].mxu0 %v44
    %v279 = vpop.f32.mrb[0].mxu0
    %v280 = vadd.f32 0.0, %v279
    %v281 = vpop.f32.mrb[0].mxu0
    %282 = vdwg.mxu0
    %283 = vmatprep.subr.mxu0 %v212
    %284 = vmatpush1.xpose.msra.mxu0 %v211
    %285 = vmatprep.subr.mxu0 0.0
    %286 = vmatpush1.xpose.msra.mxu0 0.0
    %287 = vmatprep.subr.mxu0 0.0
    %288 = vmatpush1.xpose.msra.mxu0 0.0
    %289 = vmatprep.subr.mxu0 0.0
    %290 = vmatpush1.xpose.msra.mxu0 0.0
    %291 = vmatprep.subr.mxu0 0.0
    %292 = vmatpush1.xpose.msra.mxu0 0.0
    %293 = vmatprep.subr.mxu0 0.0
    %294 = vmatpush1.xpose.msra.mxu0 0.0
    %295 = vmatprep.subr.mxu0 0.0
    %296 = vmatpush1.xpose.msra.mxu0 0.0
    %297 = vmatprep.subr.mxu0 0.0
    %298 = vmatpush1.xpose.msra.mxu0 0.0
    %299 = vmatprep.subr.mxu0 0.0
    %300 = vmatpush1.xpose.msra.mxu0 0.0
    %301 = vmatprep.subr.mxu0 0.0
    %302 = vmatpush1.xpose.msra.mxu0 0.0
    %303 = vmatprep.subr.mxu0 0.0
    %304 = vmatpush1.xpose.msra.mxu0 0.0
    %305 = vmatprep.subr.mxu0 0.0
    %306 = vmatpush1.xpose.msra.mxu0 0.0
    %307 = vmatprep.subr.mxu0 0.0
    %308 = vmatpush1.xpose.msra.mxu0 0.0
    %309 = vmatprep.subr.mxu0 0.0
    %310 = vmatpush1.xpose.msra.mxu0 0.0
    %311 = vmatprep.subr.mxu0 0.0
    %312 = vmatpush1.xpose.msra.mxu0 0.0
    %313 = vmatprep.subr.mxu0 0.0
    %314 = vmatpush1.xpose.msra.mxu0 0.0
    %315 = vmatprep.subr.mxu0 0.0
    %316 = vmatpush1.xpose.msra.mxu0 0.0
    %317 = vmatprep.subr.mxu0 0.0
    %318 = vmatpush1.xpose.msra.mxu0 0.0
    %319 = vmatprep.subr.mxu0 0.0
    %320 = vmatpush1.xpose.msra.mxu0 0.0
    %321 = vmatprep.subr.mxu0 0.0
    %322 = vmatpush1.xpose.msra.mxu0 0.0
    %323 = vmatprep.subr.mxu0 0.0
    %324 = vmatpush1.xpose.msra.mxu0 0.0
    %325 = vmatprep.subr.mxu0 0.0
    %326 = vmatpush1.xpose.msra.mxu0 0.0
    %327 = vmatprep.subr.mxu0 0.0
    %328 = vmatpush1.xpose.msra.mxu0 0.0
    %329 = vmatprep.subr.mxu0 0.0
    %330 = vmatpush1.xpose.msra.mxu0 0.0
    %331 = vmatprep.subr.mxu0 0.0
    %332 = vmatpush1.xpose.msra.mxu0 0.0
    %333 = vmatprep.subr.mxu0 0.0
    %334 = vmatpush1.xpose.msra.mxu0 0.0
    %335 = vmatprep.subr.mxu0 0.0
    %336 = vmatpush1.xpose.msra.mxu0 0.0
    %337 = vmatprep.subr.mxu0 0.0
    %338 = vmatpush1.xpose.msra.mxu0 0.0
    %339 = vmatprep.subr.mxu0 0.0
    %340 = vmatpush1.xpose.msra.mxu0 0.0
    %341 = vmatprep.subr.mxu0 0.0
    %342 = vmatpush1.xpose.msra.mxu0 0.0
    %343 = vmatprep.subr.mxu0 0.0
    %344 = vmatpush1.xpose.msra.mxu0 0.0
    %345 = vmatprep.subr.mxu0 0.0
    %346 = vmatpush1.xpose.msra.mxu0 0.0
    %347 = vmatprep.mubr.f32.mxu0 %v47
    %348 = vmatmul.mubr.f32.gmra.mrb[0].mxu0 %v46
    %v349 = vpop.f32.mrb[0].mxu0
    %v350 = vadd.f32 %v280, %v349
    %v351 = vpop.f32.mrb[0].mxu0
    %352 = vdwg.mxu0
    %v353 = vlaneseq
    %v354 = vshrl.u32 %v353, 7
    %v355 = vsub.s32 0, %v354
    %v356 = vrot.slane %v49, %v355
    %357 = vrot.lane.b32.xlu0 %v48, 123
    %v358 = vpop.permute.xlu0 %357
    %361 = vrot.lane.b32.xlu0 %v356, 123
    %v362 = vpop.permute.xlu0 %361
    %vm364 = vcmask 64512
    %v366 = vsel %vm364, %v350, 0
    %368 = vmatprep.subr.mxu0 0.0
    %369 = vmatpush1.msra.mxu0 %v358
    %370 = vmatprep.subr.mxu0 0.0
    %371 = vmatpush1.msra.mxu0 0.0
    %372 = vmatprep.subr.mxu0 0.0
    %373 = vmatpush1.msra.mxu0 0.0
    %374 = vmatprep.subr.mxu0 0.0
    %375 = vmatpush1.msra.mxu0 0.0
    %376 = vmatprep.subr.mxu0 0.0
    %377 = vmatpush1.msra.mxu0 0.0
    %378 = vmatprep.subr.mxu0 0.0
    %379 = vmatpush1.msra.mxu0 0.0
    %380 = vmatprep.subr.mxu0 0.0
    %381 = vmatpush1.msra.mxu0 0.0
    %382 = vmatprep.subr.mxu0 0.0
    %383 = vmatpush1.msra.mxu0 0.0
    %384 = vmatprep.subr.mxu0 0.0
    %385 = vmatpush1.msra.mxu0 0.0
    %386 = vmatprep.subr.mxu0 0.0
    %387 = vmatpush1.msra.mxu0 0.0
    %388 = vmatprep.subr.mxu0 0.0
    %389 = vmatpush1.msra.mxu0 0.0
    %390 = vmatprep.subr.mxu0 0.0
    %391 = vmatpush1.msra.mxu0 0.0
    %392 = vmatprep.subr.mxu0 0.0
    %393 = vmatpush1.msra.mxu0 0.0
    %394 = vmatprep.subr.mxu0 0.0
    %395 = vmatpush1.msra.mxu0 0.0
    %396 = vmatprep.subr.mxu0 0.0
    %397 = vmatpush1.msra.mxu0 0.0
    %398 = vmatprep.subr.mxu0 0.0
    %399 = vmatpush1.msra.mxu0 0.0
    %400 = vmatprep.subr.mxu0 0.0
    %401 = vmatpush1.msra.mxu0 0.0
    %402 = vmatprep.subr.mxu0 0.0
    %403 = vmatpush1.msra.mxu0 0.0
    %404 = vmatprep.subr.mxu0 0.0
    %405 = vmatpush1.msra.mxu0 0.0
    %406 = vmatprep.subr.mxu0 0.0
    %407 = vmatpush1.msra.mxu0 0.0
    %408 = vmatprep.subr.mxu0 0.0
    %409 = vmatpush1.msra.mxu0 0.0
    %410 = vmatprep.subr.mxu0 0.0
    %411 = vmatpush1.msra.mxu0 0.0
    %412 = vmatprep.subr.mxu0 0.0
    %413 = vmatpush1.msra.mxu0 0.0
    %414 = vmatprep.subr.mxu0 0.0
    %415 = vmatpush1.msra.mxu0 0.0
    %416 = vmatprep.subr.mxu0 0.0
    %417 = vmatpush1.msra.mxu0 0.0
    %418 = vmatprep.subr.mxu0 0.0
    %419 = vmatpush1.msra.mxu0 0.0
    %420 = vmatprep.subr.mxu0 0.0
    %421 = vmatpush1.msra.mxu0 0.0
    %422 = vmatprep.subr.mxu0 0.0
    %423 = vmatpush1.msra.mxu0 0.0
    %424 = vmatprep.subr.mxu0 0.0
    %425 = vmatpush1.msra.mxu0 0.0
    %426 = vmatprep.subr.mxu0 0.0
    %427 = vmatpush1.msra.mxu0 0.0
    %428 = vmatprep.subr.mxu0 0.0
    %429 = vmatpush1.msra.mxu0 0.0
    %430 = vmatprep.subr.mxu0 0.0
    %431 = vmatpush1.msra.mxu0 0.0
    %432 = vmatprep.mubr.f32.mxu0 0.0
    %433 = vmatmul.mubr.f32.gmra.mrb[0].mxu0 %v366
    %v434 = vpop.f32.mrb[0].mxu0
    %v435 = vadd.f32 %v362, %v434
    %v436 = vpop.f32.mrb[0].mxu0
    %437 = vdwg.mxu0
    %v438 = vld [vmem:[%s2] sm:$0xff]
    %v439 = vld [vmem:[%s2 + $0x8] sm:$0x1f]
    %v441 = vsel %vm50, %v438, 0
    %v444 = vsel %vm50, %v439, 0
    %446 = vmatprep.subr.mxu0 %v59
    %447 = vmatpush1.msra.mxu0 %v56
    %448 = vmatprep.subr.mxu0 0.0
    %449 = vmatpush1.msra.mxu0 0.0
    %450 = vmatprep.subr.mxu0 0.0
    %451 = vmatpush1.msra.mxu0 0.0
    %452 = vmatprep.subr.mxu0 0.0
    %453 = vmatpush1.msra.mxu0 0.0
    %454 = vmatprep.subr.mxu0 0.0
    %455 = vmatpush1.msra.mxu0 0.0
    %456 = vmatprep.subr.mxu0 0.0
    %457 = vmatpush1.msra.mxu0 0.0
    %458 = vmatprep.subr.mxu0 0.0
    %459 = vmatpush1.msra.mxu0 0.0
    %460 = vmatprep.subr.mxu0 0.0
    %461 = vmatpush1.msra.mxu0 0.0
    %462 = vmatprep.subr.mxu0 0.0
    %463 = vmatpush1.msra.mxu0 0.0
    %464 = vmatprep.subr.mxu0 0.0
    %465 = vmatpush1.msra.mxu0 0.0
    %466 = vmatprep.subr.mxu0 0.0
    %467 = vmatpush1.msra.mxu0 0.0
    %468 = vmatprep.subr.mxu0 0.0
    %469 = vmatpush1.msra.mxu0 0.0
    %470 = vmatprep.subr.mxu0 0.0
    %471 = vmatpush1.msra.mxu0 0.0
    %472 = vmatprep.subr.mxu0 0.0
    %473 = vmatpush1.msra.mxu0 0.0
    %474 = vmatprep.subr.mxu0 0.0
    %475 = vmatpush1.msra.mxu0 0.0
    %476 = vmatprep.subr.mxu0 0.0
    %477 = vmatpush1.msra.mxu0 0.0
    %478 = vmatprep.subr.mxu0 0.0
    %479 = vmatpush1.msra.mxu0 0.0
    %480 = vmatprep.subr.mxu0 0.0
    %481 = vmatpush1.msra.mxu0 0.0
    %482 = vmatprep.subr.mxu0 0.0
    %483 = vmatpush1.msra.mxu0 0.0
    %484 = vmatprep.subr.mxu0 0.0
    %485 = vmatpush1.msra.mxu0 0.0
    %486 = vmatprep.subr.mxu0 0.0
    %487 = vmatpush1.msra.mxu0 0.0
    %488 = vmatprep.subr.mxu0 0.0
    %489 = vmatpush1.msra.mxu0 0.0
    %490 = vmatprep.subr.mxu0 0.0
    %491 = vmatpush1.msra.mxu0 0.0
    %492 = vmatprep.subr.mxu0 0.0
    %493 = vmatpush1.msra.mxu0 0.0
    %494 = vmatprep.subr.mxu0 0.0
    %495 = vmatpush1.msra.mxu0 0.0
    %496 = vmatprep.subr.mxu0 0.0
    %497 = vmatpush1.msra.mxu0 0.0
    %498 = vmatprep.subr.mxu0 0.0
    %499 = vmatpush1.msra.mxu0 0.0
    %500 = vmatprep.subr.mxu0 0.0
    %501 = vmatpush1.msra.mxu0 0.0
    %502 = vmatprep.subr.mxu0 0.0
    %503 = vmatpush1.msra.mxu0 0.0
    %504 = vmatprep.subr.mxu0 0.0
    %505 = vmatpush1.msra.mxu0 0.0
    %506 = vmatprep.subr.mxu0 0.0
    %507 = vmatpush1.msra.mxu0 0.0
    %508 = vmatprep.subr.mxu0 0.0
    %509 = vmatpush1.msra.mxu0 0.0
    %510 = vmatprep.mubr.f32.mxu0 0.0
    %511 = vmatmul.mubr.f32.gmra.mrb[0].mxu0 %v441
    %v512 = vpop.f32.mrb[0].mxu0
    %v513 = vadd.f32 0.0, %v512
    %v514 = vpop.f32.mrb[0].mxu0
    %v515 = vadd.f32 0.0, %v514
    %516 = vmatprep.mubr.f32.mxu0 0.0
    %517 = vmatmul.mubr.f32.gmra.mrb[0].mxu0 %v444
    %v518 = vpop.f32.mrb[0].mxu0
    %v519 = vadd.f32 0.0, %v518
    %v520 = vpop.f32.mrb[0].mxu0
    %v521 = vadd.f32 0.0, %v520
    %522 = vdwg.mxu0
    %523 = vmatprep.subr.mxu0 %v65
    %524 = vmatpush1.msra.mxu0 %v62
    %525 = vmatprep.subr.mxu0 0.0
    %526 = vmatpush1.msra.mxu0 0.0
    %527 = vmatprep.subr.mxu0 0.0
    %528 = vmatpush1.msra.mxu0 0.0
    %529 = vmatprep.subr.mxu0 0.0
    %530 = vmatpush1.msra.mxu0 0.0
    %531 = vmatprep.subr.mxu0 0.0
    %532 = vmatpush1.msra.mxu0 0.0
    %533 = vmatprep.subr.mxu0 0.0
    %534 = vmatpush1.msra.mxu0 0.0
    %535 = vmatprep.subr.mxu0 0.0
    %536 = vmatpush1.msra.mxu0 0.0
    %537 = vmatprep.subr.mxu0 0.0
    %538 = vmatpush1.msra.mxu0 0.0
    %539 = vmatprep.subr.mxu0 0.0
    %540 = vmatpush1.msra.mxu0 0.0
    %541 = vmatprep.subr.mxu0 0.0
    %542 = vmatpush1.msra.mxu0 0.0
    %543 = vmatprep.subr.mxu0 0.0
    %544 = vmatpush1.msra.mxu0 0.0
    %545 = vmatprep.subr.mxu0 0.0
    %546 = vmatpush1.msra.mxu0 0.0
    %547 = vmatprep.subr.mxu0 0.0
    %548 = vmatpush1.msra.mxu0 0.0
    %549 = vmatprep.subr.mxu0 0.0
    %550 = vmatpush1.msra.mxu0 0.0
    %551 = vmatprep.subr.mxu0 0.0
    %552 = vmatpush1.msra.mxu0 0.0
    %553 = vmatprep.subr.mxu0 0.0
    %554 = vmatpush1.msra.mxu0 0.0
    %555 = vmatprep.subr.mxu0 0.0
    %556 = vmatpush1.msra.mxu0 0.0
    %557 = vmatprep.subr.mxu0 0.0
    %558 = vmatpush1.msra.mxu0 0.0
    %559 = vmatprep.subr.mxu0 0.0
    %560 = vmatpush1.msra.mxu0 0.0
    %561 = vmatprep.subr.mxu0 0.0
    %562 = vmatpush1.msra.mxu0 0.0
    %563 = vmatprep.subr.mxu0 0.0
    %564 = vmatpush1.msra.mxu0 0.0
    %565 = vmatprep.subr.mxu0 0.0
    %566 = vmatpush1.msra.mxu0 0.0
    %567 = vmatprep.subr.mxu0 0.0
    %568 = vmatpush1.msra.mxu0 0.0
    %569 = vmatprep.subr.mxu0 0.0
    %570 = vmatpush1.msra.mxu0 0.0
    %571 = vmatprep.subr.mxu0 0.0
    %572 = vmatpush1.msra.mxu0 0.0
    %573 = vmatprep.subr.mxu0 0.0
    %574 = vmatpush1.msra.mxu0 0.0
    %575 = vmatprep.subr.mxu0 0.0
    %576 = vmatpush1.msra.mxu0 0.0
    %577 = vmatprep.subr.mxu0 0.0
    %578 = vmatpush1.msra.mxu0 0.0
    %579 = vmatprep.subr.mxu0 0.0
    %580 = vmatpush1.msra.mxu0 0.0
    %581 = vmatprep.subr.mxu0 0.0
    %582 = vmatpush1.msra.mxu0 0.0
    %583 = vmatprep.subr.mxu0 0.0
    %584 = vmatpush1.msra.mxu0 0.0
    %585 = vmatprep.subr.mxu0 0.0
    %586 = vmatpush1.msra.mxu0 0.0
    %587 = vmatprep.mubr.f32.mxu0 0.0
    %588 = vmatmul.mubr.f32.gmra.mrb[0].mxu0 %v441
    %v589 = vpop.f32.mrb[0].mxu0
    %v590 = vadd.f32 0.0, %v589
    %v591 = vpop.f32.mrb[0].mxu0
    %v592 = vadd.f32 0.0, %v591
    %593 = vmatprep.mubr.f32.mxu0 0.0
    %594 = vmatmul.mubr.f32.gmra.mrb[0].mxu0 %v444
    %v595 = vpop.f32.mrb[0].mxu0
    %v596 = vadd.f32 0.0, %v595
    %v597 = vpop.f32.mrb[0].mxu0
    %v598 = vadd.f32 0.0, %v597
    %599 = vdwg.mxu0
    %v600 = vmax.f32 %v513, 0.0
    %v601 = vmax.f32 %v515, 0.0
    %v602 = vmax.f32 %v590, 0.0
    %v603 = vmax.f32 %v592, 0.0
    %v604 = vmax.f32 %v519, 0.0
    %v605 = vmax.f32 %v521, 0.0
    %v606 = vmax.f32 %v596, 0.0
    %v607 = vmax.f32 %v598, 0.0
    %608 = vmatprep.subr.mxu0 %v601
    %609 = vmatpush1.xpose.msra.mxu0 %v600
    %610 = vmatprep.subr.mxu0 %v605
    %611 = vmatpush1.xpose.msra.mxu0 %v604
    %612 = vmatprep.subr.mxu0 0.0
    %613 = vmatpush1.xpose.msra.mxu0 0.0
    %614 = vmatprep.subr.mxu0 0.0
    %615 = vmatpush1.xpose.msra.mxu0 0.0
    %616 = vmatprep.subr.mxu0 0.0
    %617 = vmatpush1.xpose.msra.mxu0 0.0
    %618 = vmatprep.subr.mxu0 0.0
    %619 = vmatpush1.xpose.msra.mxu0 0.0
    %620 = vmatprep.subr.mxu0 0.0
    %621 = vmatpush1.xpose.msra.mxu0 0.0
    %622 = vmatprep.subr.mxu0 0.0
    %623 = vmatpush1.xpose.msra.mxu0 0.0
    %624 = vmatprep.subr.mxu0 0.0
    %625 = vmatpush1.xpose.msra.mxu0 0.0
    %626 = vmatprep.subr.mxu0 0.0
    %627 = vmatpush1.xpose.msra.mxu0 0.0
    %628 = vmatprep.subr.mxu0 0.0
    %629 = vmatpush1.xpose.msra.mxu0 0.0
    %630 = vmatprep.subr.mxu0 0.0
    %631 = vmatpush1.xpose.msra.mxu0 0.0
    %632 = vmatprep.subr.mxu0 0.0
    %633 = vmatpush1.xpose.msra.mxu0 0.0
    %634 = vmatprep.subr.mxu0 0.0
    %635 = vmatpush1.xpose.msra.mxu0 0.0
    %636 = vmatprep.subr.mxu0 0.0
    %637 = vmatpush1.xpose.msra.mxu0 0.0
    %638 = vmatprep.subr.mxu0 0.0
    %639 = vmatpush1.xpose.msra.mxu0 0.0
    %640 = vmatprep.subr.mxu0 0.0
    %641 = vmatpush1.xpose.msra.mxu0 0.0
    %642 = vmatprep.subr.mxu0 0.0
    %643 = vmatpush1.xpose.msra.mxu0 0.0
    %644 = vmatprep.subr.mxu0 0.0
    %645 = vmatpush1.xpose.msra.mxu0 0.0
    %646 = vmatprep.subr.mxu0 0.0
    %647 = vmatpush1.xpose.msra.mxu0 0.0
    %648 = vmatprep.subr.mxu0 0.0
    %649 = vmatpush1.xpose.msra.mxu0 0.0
    %650 = vmatprep.subr.mxu0 0.0
    %651 = vmatpush1.xpose.msra.mxu0 0.0
    %652 = vmatprep.subr.mxu0 0.0
    %653 = vmatpush1.xpose.msra.mxu0 0.0
    %654 = vmatprep.subr.mxu0 0.0
    %655 = vmatpush1.xpose.msra.mxu0 0.0
    %656 = vmatprep.subr.mxu0 0.0
    %657 = vmatpush1.xpose.msra.mxu0 0.0
    %658 = vmatprep.subr.mxu0 0.0
    %659 = vmatpush1.xpose.msra.mxu0 0.0
    %660 = vmatprep.subr.mxu0 0.0
    %661 = vmatpush1.xpose.msra.mxu0 0.0
    %662 = vmatprep.subr.mxu0 0.0
    %663 = vmatpush1.xpose.msra.mxu0 0.0
    %664 = vmatprep.subr.mxu0 0.0
    %665 = vmatpush1.xpose.msra.mxu0 0.0
    %666 = vmatprep.subr.mxu0 0.0
    %667 = vmatpush1.xpose.msra.mxu0 0.0
    %668 = vmatprep.subr.mxu0 0.0
    %669 = vmatpush1.xpose.msra.mxu0 0.0
    %670 = vmatprep.subr.mxu0 0.0
    %671 = vmatpush1.xpose.msra.mxu0 0.0
    %672 = vmatprep.mubr.f32.mxu0 %v45
    %673 = vmatmul.mubr.f32.gmra.mrb[0].mxu0 %v44
    %v674 = vpop.f32.mrb[0].mxu0
    %v675 = vadd.f32 0.0, %v674
    %v676 = vpop.f32.mrb[0].mxu0
    %677 = vdwg.mxu0
    %678 = vmatprep.subr.mxu0 %v603
    %679 = vmatpush1.xpose.msra.mxu0 %v602
    %680 = vmatprep.subr.mxu0 %v607
    %681 = vmatpush1.xpose.msra.mxu0 %v606
    %682 = vmatprep.subr.mxu0 0.0
    %683 = vmatpush1.xpose.msra.mxu0 0.0
    %684 = vmatprep.subr.mxu0 0.0
    %685 = vmatpush1.xpose.msra.mxu0 0.0
    %686 = vmatprep.subr.mxu0 0.0
    %687 = vmatpush1.xpose.msra.mxu0 0.0
    %688 = vmatprep.subr.mxu0 0.0
    %689 = vmatpush1.xpose.msra.mxu0 0.0
    %690 = vmatprep.subr.mxu0 0.0
    %691 = vmatpush1.xpose.msra.mxu0 0.0
    %692 = vmatprep.subr.mxu0 0.0
    %693 = vmatpush1.xpose.msra.mxu0 0.0
    %694 = vmatprep.subr.mxu0 0.0
    %695 = vmatpush1.xpose.msra.mxu0 0.0
    %696 = vmatprep.subr.mxu0 0.0
    %697 = vmatpush1.xpose.msra.mxu0 0.0
    %698 = vmatprep.subr.mxu0 0.0
    %699 = vmatpush1.xpose.msra.mxu0 0.0
    %700 = vmatprep.subr.mxu0 0.0
    %701 = vmatpush1.xpose.msra.mxu0 0.0
    %702 = vmatprep.subr.mxu0 0.0
    %703 = vmatpush1.xpose.msra.mxu0 0.0
    %704 = vmatprep.subr.mxu0 0.0
    %705 = vmatpush1.xpose.msra.mxu0 0.0
    %706 = vmatprep.subr.mxu0 0.0
    %707 = vmatpush1.xpose.msra.mxu0 0.0
    %708 = vmatprep.subr.mxu0 0.0
    %709 = vmatpush1.xpose.msra.mxu0 0.0
    %710 = vmatprep.subr.mxu0 0.0
    %711 = vmatpush1.xpose.msra.mxu0 0.0
    %712 = vmatprep.subr.mxu0 0.0
    %713 = vmatpush1.xpose.msra.mxu0 0.0
    %714 = vmatprep.subr.mxu0 0.0
    %715 = vmatpush1.xpose.msra.mxu0 0.0
    %716 = vmatprep.subr.mxu0 0.0
    %717 = vmatpush1.xpose.msra.mxu0 0.0
    %718 = vmatprep.subr.mxu0 0.0
    %719 = vmatpush1.xpose.msra.mxu0 0.0
    %720 = vmatprep.subr.mxu0 0.0
    %721 = vmatpush1.xpose.msra.mxu0 0.0
    %722 = vmatprep.subr.mxu0 0.0
    %723 = vmatpush1.xpose.msra.mxu0 0.0
    %724 = vmatprep.subr.mxu0 0.0
    %725 = vmatpush1.xpose.msra.mxu0 0.0
    %726 = vmatprep.subr.mxu0 0.0
    %727 = vmatpush1.xpose.msra.mxu0 0.0
    %728 = vmatprep.subr.mxu0 0.0
    %729 = vmatpush1.xpose.msra.mxu0 0.0
    %730 = vmatprep.subr.mxu0 0.0
    %731 = vmatpush1.xpose.msra.mxu0 0.0
    %732 = vmatprep.subr.mxu0 0.0
    %733 = vmatpush1.xpose.msra.mxu0 0.0
    %734 = vmatprep.subr.mxu0 0.0
    %735 = vmatpush1.xpose.msra.mxu0 0.0
    %736 = vmatprep.subr.mxu0 0.0
    %737 = vmatpush1.xpose.msra.mxu0 0.0
    %738 = vmatprep.subr.mxu0 0.0
    %739 = vmatpush1.xpose.msra.mxu0 0.0
    %740 = vmatprep.subr.mxu0 0.0
    %741 = vmatpush1.xpose.msra.mxu0 0.0
    %742 = vmatprep.mubr.f32.mxu0 %v47
    %743 = vmatmul.mubr.f32.gmra.mrb[0].mxu0 %v46
    %v744 = vpop.f32.mrb[0].mxu0
    %v745 = vadd.f32 %v675, %v744
    %v746 = vpop.f32.mrb[0].mxu0
    %747 = vdwg.mxu0
    %v748 = vlaneseq
    %v749 = vshrl.u32 %v748, 7
    %v750 = vsub.s32 4, %v749
    %v751 = vrot.slane %v439, %v750
    %752 = vrot.lane.b32.xlu0 %v438, 123
    %v753 = vpop.permute.xlu0 %752
    %754 = vrot.lane.b32.xlu0 %v439, 123
    %v755 = vpop.permute.xlu0 %754
    %758 = vrot.lane.b32.xlu0 %v751, 123
    %v759 = vpop.permute.xlu0 %758
    %vm761 = vcmask 97280
    %v763 = vsel %vm761, %v745, 0
    %vm765 = vcmask 1043456
    %v766 = vsel %vm765, %v755, 0
    %768 = vmatprep.subr.mxu0 0.0
    %769 = vmatpush1.msra.mxu0 %v753
    %770 = vmatprep.subr.mxu0 0.0
    %771 = vmatpush1.msra.mxu0 %v766
    %772 = vmatprep.subr.mxu0 0.0
    %773 = vmatpush1.msra.mxu0 0.0
    %774 = vmatprep.subr.mxu0 0.0
    %775 = vmatpush1.msra.mxu0 0.0
    %776 = vmatprep.subr.mxu0 0.0
    %777 = vmatpush1.msra.mxu0 0.0
    %778 = vmatprep.subr.mxu0 0.0
    %779 = vmatpush1.msra.mxu0 0.0
    %780 = vmatprep.subr.mxu0 0.0
    %781 = vmatpush1.msra.mxu0 0.0
    %782 = vmatprep.subr.mxu0 0.0
    %783 = vmatpush1.msra.mxu0 0.0
    %784 = vmatprep.subr.mxu0 0.0
    %785 = vmatpush1.msra.mxu0 0.0
    %786 = vmatprep.subr.mxu0 0.0
    %787 = vmatpush1.msra.mxu0 0.0
    %788 = vmatprep.subr.mxu0 0.0
    %789 = vmatpush1.msra.mxu0 0.0
    %790 = vmatprep.subr.mxu0 0.0
    %791 = vmatpush1.msra.mxu0 0.0
    %792 = vmatprep.subr.mxu0 0.0
    %793 = vmatpush1.msra.mxu0 0.0
    %794 = vmatprep.subr.mxu0 0.0
    %795 = vmatpush1.msra.mxu0 0.0
    %796 = vmatprep.subr.mxu0 0.0
    %797 = vmatpush1.msra.mxu0 0.0
    %798 = vmatprep.subr.mxu0 0.0
    %799 = vmatpush1.msra.mxu0 0.0
    %800 = vmatprep.subr.mxu0 0.0
    %801 = vmatpush1.msra.mxu0 0.0
    %802 = vmatprep.subr.mxu0 0.0
    %803 = vmatpush1.msra.mxu0 0.0
    %804 = vmatprep.subr.mxu0 0.0
    %805 = vmatpush1.msra.mxu0 0.0
    %806 = vmatprep.subr.mxu0 0.0
    %807 = vmatpush1.msra.mxu0 0.0
    %808 = vmatprep.subr.mxu0 0.0
    %809 = vmatpush1.msra.mxu0 0.0
    %810 = vmatprep.subr.mxu0 0.0
    %811 = vmatpush1.msra.mxu0 0.0
    %812 = vmatprep.subr.mxu0 0.0
    %813 = vmatpush1.msra.mxu0 0.0
    %814 = vmatprep.subr.mxu0 0.0
    %815 = vmatpush1.msra.mxu0 0.0
    %816 = vmatprep.subr.mxu0 0.0
    %817 = vmatpush1.msra.mxu0 0.0
    %818 = vmatprep.subr.mxu0 0.0
    %819 = vmatpush1.msra.mxu0 0.0
    %820 = vmatprep.subr.mxu0 0.0
    %821 = vmatpush1.msra.mxu0 0.0
    %822 = vmatprep.subr.mxu0 0.0
    %823 = vmatpush1.msra.mxu0 0.0
    %824 = vmatprep.subr.mxu0 0.0
    %825 = vmatpush1.msra.mxu0 0.0
    %826 = vmatprep.subr.mxu0 0.0
    %827 = vmatpush1.msra.mxu0 0.0
    %828 = vmatprep.subr.mxu0 0.0
    %829 = vmatpush1.msra.mxu0 0.0
    %830 = vmatprep.subr.mxu0 0.0
    %831 = vmatpush1.msra.mxu0 0.0
    %832 = vmatprep.mubr.f32.mxu0 0.0
    %833 = vmatmul.mubr.f32.gmra.mrb[0].mxu0 %v763
    %v834 = vpop.f32.mrb[0].mxu0
    %v835 = vadd.f32 %v759, %v834
    %v836 = vpop.f32.mrb[0].mxu0
    %837 = vdwg.mxu0
    %vm838 = vcmask 123904
    %839 = vst.msk [vmem:[#allocation2] sm:$0x3] %vm838, %v435
    %v840 = vmul.f32 %v209, %v209
    %v841 = vmul.f32 %v210, %v210
    %v842 = vmul.f32 %v211, %v211
    %v843 = vmul.f32 %v212, %v212
    %v844 = vrot.slane %v840, 4
    %v845 = vadd.f32 %v840, %v844
    %v846 = vrot.slane %v845, 2
    %v847 = vadd.f32 %v845, %v846
    %v848 = vrot.slane %v847, 1
    %v849 = vadd.f32 %v847, %v848
    %v850 = vrot.slane %v841, 4
    %v851 = vadd.f32 %v841, %v850
    %v852 = vrot.slane %v851, 2
    %v853 = vadd.f32 %v851, %v852
    %v854 = vrot.slane %v853, 1
    %v855 = vadd.f32 %v853, %v854
    %v856 = vrot.slane %v842, 4
    %v857 = vadd.f32 %v842, %v856
    %v858 = vrot.slane %v857, 2
    %v859 = vadd.f32 %v857, %v858
    %v860 = vrot.slane %v859, 1
    %v861 = vadd.f32 %v859, %v860
    %v862 = vrot.slane %v843, 4
    %v863 = vadd.f32 %v843, %v862
    %v864 = vrot.slane %v863, 2
    %v865 = vadd.f32 %v863, %v864
    %v866 = vrot.slane %v865, 1
    %v867 = vadd.f32 %v865, %v866
    %v868 = vmul.f32 %v849, 0.125
    %v869 = vmul.f32 %v855, 0.125
    %v870 = vmul.f32 %v861, 0.125
    %v871 = vmul.f32 %v867, 0.125
    %v872 = vmul.f32 %v600, %v600
    %v873 = vmul.f32 %v601, %v601
    %v874 = vmul.f32 %v602, %v602
    %v875 = vmul.f32 %v603, %v603
    %v876 = vmul.f32 %v604, %v604
    %v877 = vmul.f32 %v605, %v605
    %v878 = vmul.f32 %v606, %v606
    %v879 = vmul.f32 %v607, %v607
    %v880 = vsel %vm765, %v876, 0.0
    %v881 = vadd.f32 %v872, %v880
    %v882 = vrot.slane %v881, 4
    %v883 = vadd.f32 %v881, %v882
    %v884 = vrot.slane %v883, 2
    %v885 = vadd.f32 %v883, %v884
    %v886 = vrot.slane %v885, 1
    %v887 = vadd.f32 %v885, %v886
    %v888 = vsel %vm765, %v877, 0.0
    %v889 = vadd.f32 %v873, %v888
    %v890 = vrot.slane %v889, 4
    %v891 = vadd.f32 %v889, %v890
    %v892 = vrot.slane %v891, 2
    %v893 = vadd.f32 %v891, %v892
    %v894 = vrot.slane %v893, 1
    %v895 = vadd.f32 %v893, %v894
    %v896 = vsel %vm765, %v878, 0.0
    %v897 = vadd.f32 %v874, %v896
    %v898 = vrot.slane %v897, 4
    %v899 = vadd.f32 %v897, %v898
    %v900 = vrot.slane %v899, 2
    %v901 = vadd.f32 %v899, %v900
    %v902 = vrot.slane %v901, 1
    %v903 = vadd.f32 %v901, %v902
    %v904 = vsel %vm765, %v879, 0.0
    %v905 = vadd.f32 %v875, %v904
    %v906 = vrot.slane %v905, 4
    %v907 = vadd.f32 %v905, %v906
    %v908 = vrot.slane %v907, 2
    %v909 = vadd.f32 %v907, %v908
    %v910 = vrot.slane %v909, 1
    %v911 = vadd.f32 %v909, %v910
    %v912 = vmul.f32 %v887, 0.083333336
    %v913 = vmul.f32 %v895, 0.083333336
    %v914 = vmul.f32 %v903, 0.083333336
    %v915 = vmul.f32 %v911, 0.083333336
    %v916 = vmul.f32 %v868, %v868
    %v917 = vmul.f32 %v869, %v869
    %v918 = vadd.f32 %v916, %v917
    %919 = vadd.xlane.f32.xlu0 %v918
    %v920 = vpop.xlane.xlu0 %919
    %v921 = vmax.f32 %v920, 1e-24
    %v922 = vrsqrt.pop %v921
    %v923 = vmul.f32 %v868, %v922
    %v924 = vmul.f32 %v869, %v922
    %v925 = vmul.f32 %v912, %v912
    %v926 = vmul.f32 %v913, %v913
    %v927 = vadd.f32 %v925, %v926
    %928 = vadd.xlane.f32.xlu0 %v927
    %v929 = vpop.xlane.xlu0 %928
    %v930 = vmax.f32 %v929, 1e-24
    %v931 = vrsqrt.pop %v930
    %v932 = vmul.f32 %v912, %v931
    %v933 = vmul.f32 %v913, %v931
    %v934 = vsub.f32 %v932, %v923
    %v935 = vsub.f32 %v933, %v924
    %v936 = vmul.f32 %v934, %v934
    %v937 = vmul.f32 %v935, %v935
    %v938 = vadd.f32 %v936, %v937
    %939 = vadd.xlane.f32.xlu0 %v938
    %v940 = vpop.xlane.xlu0 %939
    %v941 = vadd.f32 %v940, 0.0
    %v942 = vmul.f32 %v870, %v870
    %v943 = vmul.f32 %v871, %v871
    %v944 = vadd.f32 %v942, %v943
    %945 = vadd.xlane.f32.xlu0 %v944
    %v946 = vpop.xlane.xlu0 %945
    %v947 = vmax.f32 %v946, 1e-24
    %v948 = vrsqrt.pop %v947
    %v949 = vmul.f32 %v870, %v948
    %v950 = vmul.f32 %v871, %v948
    %v951 = vmul.f32 %v914, %v914
    %v952 = vmul.f32 %v915, %v915
    %v953 = vadd.f32 %v951, %v952
    %954 = vadd.xlane.f32.xlu0 %v953
    %v955 = vpop.xlane.xlu0 %954
    %v956 = vmax.f32 %v955, 1e-24
    %v957 = vrsqrt.pop %v956
    %v958 = vmul.f32 %v914, %v957
    %v959 = vmul.f32 %v915, %v957
    %v960 = vsub.f32 %v958, %v949
    %v961 = vsub.f32 %v959, %v950
    %v962 = vmul.f32 %v960, %v960
    %v963 = vmul.f32 %v961, %v961
    %v964 = vadd.f32 %v962, %v963
    %965 = vadd.xlane.f32.xlu0 %v964
    %v966 = vpop.xlane.xlu0 %965
    %v967 = vadd.f32 %v941, %v966
    %v968 = vmul.f32 %v967, 0.001953125
    %vm969 = vcmask 0
    %970 = vst.msk [vmem:[#allocation4] sm:$0x1] %vm969, %v968
    %v971 = vsel %vm838, %v435, 0.0
    %972 = vadd.xlane.f32.xlu0 %v971
    %v973 = vpop.xlane.xlu0 %972
    %v974 = vrcp.pop 16.0
    %v975 = vmul.f32 %v973, %v974
    %v976 = vsub.f32 %v435, %v975
    %v977 = vmul.f32 %v976, %v976
    %v978 = vsel %vm838, %v977, 0.0
    %979 = vadd.xlane.f32.xlu0 %v978
    %v980 = vpop.xlane.xlu0 %979
    %v981 = vmul.f32 %v980, 0.06666667
    %v982 = vrsqrt.pop %v981
    %v983 = vmul.f32 %v981, %v982
    %vm984 = vcmp.eq.f32.partialorder %v981, inf
    %v985 = vsel %vm984, %v981, %v983
    %vm986 = vcmp.eq.f32.partialorder %v981, 0.0
    %v987 = vand.u32 %v981, 2147483648
    %v988 = vsel %vm986, %v987, %v985
    %v989 = vadd.f32 %v988, 1e-07
    %v990 = vrcp.pop %v989
    %v991 = vmul.f32 %v976, %v990
    %v992 = vmul.f32 %v991, 0.25
    %v993 = vsel %vm838, %v835, 0.0
    %994 = vadd.xlane.f32.xlu0 %v993
    %v995 = vpop.xlane.xlu0 %994
    %v996 = vmul.f32 %v995, %v974
    %v997 = vsub.f32 %v835, %v996
    %v998 = vmul.f32 %v997, %v997
    %v999 = vsel %vm838, %v998, 0.0
    %1000 = vadd.xlane.f32.xlu0 %v999
    %v1001 = vpop.xlane.xlu0 %1000
    %v1002 = vmul.f32 %v1001, 0.06666667
    %v1003 = vrsqrt.pop %v1002
    %v1004 = vmul.f32 %v1002, %v1003
    %vm1005 = vcmp.eq.f32.partialorder %v1002, inf
    %v1006 = vsel %vm1005, %v1002, %v1004
    %vm1007 = vcmp.eq.f32.partialorder %v1002, 0.0
    %v1008 = vand.u32 %v1002, 2147483648
    %v1009 = vsel %vm1007, %v1008, %v1006
    %v1010 = vadd.f32 %v1009, 1e-07
    %v1011 = vrcp.pop %v1010
    %v1012 = vmul.f32 %v997, %v1011
    %v1013 = vmul.f32 %v1012, 0.25
    %v1014 = vsel %vm838, %v992, -inf
    %1015 = vmax.xlane.f32.xlu0 %v1014
    %v1016 = vpop.xlane.xlu0 %1015
    %v1017 = vsub.f32 %v992, %v1016
    %v1018 = vmul.f32 %v1017, 1.442695
    %v1019 = vpow.pop %v1018
    %v1020 = vsel %vm838, %v1019, 0.0
    %1021 = vadd.xlane.f32.xlu0 %v1020
    %v1022 = vpop.xlane.xlu0 %1021
    %v1023 = vlog2.pop %v1022
    %v1024 = vmul.f32 %v1023, 0.6931472
    %v1025 = vsub.f32 %v1017, %v1024
    %v1026 = vsel %vm838, %v1013, -inf
    %1027 = vmax.xlane.f32.xlu0 %v1026
    %v1028 = vpop.xlane.xlu0 %1027
    %v1029 = vsub.f32 %v1013, %v1028
    %v1030 = vmul.f32 %v1029, 1.442695
    %v1031 = vpow.pop %v1030
    %v1032 = vsel %vm838, %v1031, 0.0
    %1033 = vadd.xlane.f32.xlu0 %v1032
    %v1034 = vpop.xlane.xlu0 %1033
    %v1035 = vlog2.pop %v1034
    %v1036 = vmul.f32 %v1035, 0.6931472
    %v1037 = vsub.f32 %v1029, %v1036
    %v1038 = vmul.f32 %v1037, 1.442695
    %v1039 = vpow.pop %v1038
    %v1040 = vsub.f32 %v1037, %v1025
    %v1041 = vmul.f32 %v1039, %v1040
    %v1042 = vsel %vm838, %v1041, 0.0
    %1043 = vadd.xlane.f32.xlu0 %v1042
    %v1044 = vpop.xlane.xlu0 %1043
    %vm1045 = vcmask 1041408
    %v1046 = vsel %vm1045, %v1044, 0.0
    %v1047 = vrot.slane %v1046, 4
    %v1048 = vadd.f32 %v1046, %v1047
    %v1049 = vrot.slane %v1048, 2
    %v1050 = vadd.f32 %v1048, %v1049
    %v1051 = vrot.slane %v1050, 1
    %v1052 = vadd.f32 %v1050, %v1051
    %v1053 = vmul.f32 %v1052, 8.0
    %1054 = vst.msk [vmem:[#allocation6] sm:$0x1] %vm969, %v1053
    // Predicated region
    $region14: #{_distill_step.1} parent=1 // pred_check
      _
    $region15: #{_distill_step.1} parent=1 // pred_check_branch
      %1056 = sbr.rel (0) target = $region17
    $region16: #{_distill_step.1} parent=1 // pred_region
      %s1058 = ssub.s32 32, 32
      %1059 = vsyncadd [#allocation3], %s1058
      %s1061 = sshll.u32 [#allocation2], 4
      %s1062 = int_to_ptr.vmem [resolvable:$true] %s1061
      %1064 = dma.vmem_to_hbm [thread:$0]  %s1062, 32, %s3, [#allocation3]
    $region17: #{_distill_step.1} parent=1 // pred_fallthru
      _
    // Predicated region
    $region18: #{_distill_step.1} parent=1 // pred_check
      _
    $region19: #{_distill_step.1} parent=1 // pred_check_branch
      %1066 = sbr.rel (0) target = $region21
    $region20: #{_distill_step.1} parent=1 // pred_region
      %s1068 = ssub.s32 16, 16
      %1069 = vsyncadd [#allocation5], %s1068
      %s1071 = sshll.u32 [#allocation4], 4
      %s1072 = int_to_ptr.vmem [resolvable:$true] %s1071
      %1074 = dma.vmem_to_hbm [thread:$0]  %s1072, 16, %s4, [#allocation5]
    $region21: #{_distill_step.1} parent=1 // pred_fallthru
      _
    // Predicated region
    $region22: #{_distill_step.1} parent=1 // pred_check
      _
    $region23: #{_distill_step.1} parent=1 // pred_check_branch
      %1076 = sbr.rel (0) target = $region25
    $region24: #{_distill_step.1} parent=1 // pred_region
      %s1078 = ssub.s32 16, 16
      %1079 = vsyncadd [#allocation5], %s1078
      %s1081 = sshll.u32 [#allocation6], 4
      %s1082 = int_to_ptr.vmem [resolvable:$true] %s1081
      %1084 = dma.vmem_to_hbm [thread:$0]  %s1082, 16, %s5, [#allocation5]
    $region25: #{_distill_step.1} parent=1 // pred_fallthru
      _
    // Predicated region
    $region26: #{_distill_step.1} parent=1 // pred_check
      _
    $region27: #{_distill_step.1} parent=1 // pred_check_branch
      %1086 = sbr.rel (0) target = $region29
    $region28: #{_distill_step.1} parent=1 // pred_region
      %1087 = dma.done [#allocation3], 32
    $region29: #{_distill_step.1} parent=1 // pred_fallthru
      _
    // Predicated region
    $region30: #{_distill_step.1} parent=1 // pred_check
      _
    $region31: #{_distill_step.1} parent=1 // pred_check_branch
      %1089 = sbr.rel (0) target = $region33
    $region32: #{_distill_step.1} parent=1 // pred_region
      %1090 = dma.done [#allocation5], 16
    $region33: #{_distill_step.1} parent=1 // pred_fallthru
      _
    // Predicated region
    $region34: #{_distill_step.1} parent=1 // pred_check
      _
    $region35: #{_distill_step.1} parent=1 // pred_check_branch
      %1092 = sbr.rel (0) target = $region37
    $region36: #{_distill_step.1} parent=1 // pred_region
      %1093 = dma.done [#allocation5], 16
    $region37: #{_distill_step.1} parent=1 // pred_fallthru
      _
    %1094 = vsyncpa [#allocation3], 1
    %1095 = vsyncpa [#allocation5], 1

</llo_original>
